<compile_context>
chip_gen: v5e
topology: v5e:2x2
jax: 0.10.0
libtpu: 0.0.40
codegen_flags: <defaults>
</compile_context>

<pallas_src>
import functools

import jax
import jax.numpy as jnp
from jax.experimental import pallas as pl
from jax.experimental.pallas import tpu as pltpu


def _label_dropout_kernel(seed_ref, label_ref, out_ref, *, threshold,
                          num_classes):
    rows, cols = label_ref.shape

    # Per-element counter: global sample index over the (rows, 128)
    # lane-dense tile.
    row_idx = jax.lax.broadcasted_iota(jnp.uint32, (rows, cols), 0)
    col_idx = jax.lax.broadcasted_iota(jnp.uint32, (rows, cols), 1)
    idx = row_idx * jnp.uint32(cols) + col_idx

    # Counter-based hash (murmur3 fmix32) of (seed, index) -> 32 uniform bits.
    seed = seed_ref[0].astype(jnp.uint32)
    x = idx * jnp.uint32(0x9E3779B9) + seed
    x = (x ^ (x >> jnp.uint32(16))) * jnp.uint32(0x85EBCA6B)
    x = (x ^ (x >> jnp.uint32(13))) * jnp.uint32(0xC2B2AE35)
    x = x ^ (x >> jnp.uint32(16))

    # Pure integer Bernoulli: P(x < threshold) == dropout_prob (32-bit grain).
    drop = x < jnp.uint32(threshold)
    out_ref[...] = jnp.where(drop, jnp.int32(num_classes), label_ref[...])


def label_dropout(image, label, seed, *, dropout_prob, num_classes):
    """Pallas implementation of LabelDropout.forward.

    Returns (image, new_label). `image` is passed through unchanged, exactly
    as in the PyTorch module.

    NOTE: `seed` should be fresh per training step (e.g. derived from the step
    counter) or the same samples are dropped every call.
    """
    assert dropout_prob > 0  # matches the PyTorch module's __init__ assert
    b = label.shape[0]
    orig_dtype = label.dtype

    # Lane-dense layout: pad B up to a multiple of 128, view as (B/128, 128).
    bp = ((b + 127) // 128) * 128
    rows = bp // 128

    lab = label if label.dtype == jnp.int32 else label.astype(jnp.int32)
    if bp != b:
        lab = jnp.pad(lab, (0, bp - b))
    lab2d = lab.reshape(rows, 128)

    seed_arr = jnp.asarray([seed], dtype=jnp.int32)

    # Fold the probability into a uint32 threshold at trace time.
    threshold = min(int(float(dropout_prob) * (2 ** 32)), 2 ** 32 - 1)

    kernel = functools.partial(
        _label_dropout_kernel,
        threshold=threshold,
        num_classes=int(num_classes),
    )

    new2d = pl.pallas_call(
        kernel,
        out_shape=jax.ShapeDtypeStruct((rows, 128), jnp.int32),
        in_specs=[
            pl.BlockSpec(memory_space=pltpu.MemorySpace.SMEM),   # seed scalar
            pl.BlockSpec(memory_space=pltpu.MemorySpace.VMEM),   # labels
        ],
        out_specs=pl.BlockSpec(memory_space=pltpu.MemorySpace.VMEM),
        input_output_aliases={1: 0},   # reuse the label buffer for the output
    )(seed_arr, lab2d)

    new_label = new2d.reshape(bp)[:b]
    if orig_dtype != jnp.int32:
        new_label = new_label.astype(orig_dtype)

    # TODO(synk): for best wall-clock, fuse this select into the downstream
    # label-embedding kernel instead of running it as a standalone launch.
    return image, new_label


if __name__ == "__main__":
    key = jax.random.PRNGKey(0)
    k_img, k_lab = jax.random.split(key)

    num_classes = 10
    dropout_prob = 0.5

    batch, channels, spatial = 2, 4, 16
    image = jax.random.normal(k_img, (batch, channels, spatial, spatial),
                              dtype=jnp.float32)          # NCHW
    label = jax.random.randint(k_lab, (batch,), 0, num_classes,
                               dtype=jnp.int32)

    out_image, out_label = label_dropout(
        image, label, seed=1234,
        dropout_prob=dropout_prob, num_classes=num_classes)

    jax.block_until_ready(out_image)
    jax.block_until_ready(out_label)

    # Sanity: image identical, labels either original or num_classes,
    # shapes/dtypes preserved.
    assert out_image.shape == image.shape
    assert bool(jnp.all(out_image == image))
    assert out_label.shape == label.shape
    assert out_label.dtype == label.dtype
    ok = jnp.logical_or(out_label == label, out_label == num_classes)
    assert bool(jnp.all(ok))

    print("KERNEL_OK")
</pallas_src>

<mosaic_0001>
module attributes {stable_mosaic.version = 11 : i64} {
  func.func @_label_dropout_kernel(%arg0: memref<1xi32, #tpu.memory_space<smem>>, %arg1: memref<1x128xi32, #tpu.memory_space<vmem>>, %arg2: memref<1x128xi32, #tpu.memory_space<vmem>>) attributes {dimension_semantics = [], scalar_prefetch = 0 : i64, scratch_operands = 0 : i64, tpu.core_type = #tpu.core_type<tc>} {
    %0 = tpu.iota {dimensions = array<i32: 0>} : vector<1x128xi32>
    %1 = tpu.iota {dimensions = array<i32: 1>} : vector<1x128xi32>
    %c128_i32 = arith.constant 128 : i32
    %2 = vector.broadcast %c128_i32 : i32 to vector<1x128xi32>
    %3 = arith.muli %0, %2 : vector<1x128xi32>
    %4 = arith.addi %3, %1 : vector<1x128xi32>
    %c0 = arith.constant 0 : index
    %5 = memref.load %arg0[%c0] : memref<1xi32, #tpu.memory_space<smem>>
    %c-1640531527_i32 = arith.constant -1640531527 : i32
    %6 = vector.broadcast %c-1640531527_i32 : i32 to vector<1x128xi32>
    %7 = arith.muli %4, %6 : vector<1x128xi32>
    %8 = vector.broadcast %5 : i32 to vector<1x128xi32>
    %9 = arith.addi %7, %8 : vector<1x128xi32>
    %c16_i32 = arith.constant 16 : i32
    %10 = vector.broadcast %c16_i32 : i32 to vector<1x128xi32>
    %11 = arith.shrui %9, %10 : vector<1x128xi32>
    %12 = arith.xori %9, %11 : vector<1x128xi32>
    %c-2048144789_i32 = arith.constant -2048144789 : i32
    %13 = vector.broadcast %c-2048144789_i32 : i32 to vector<1x128xi32>
    %14 = arith.muli %12, %13 : vector<1x128xi32>
    %c13_i32 = arith.constant 13 : i32
    %15 = vector.broadcast %c13_i32 : i32 to vector<1x128xi32>
    %16 = arith.shrui %14, %15 : vector<1x128xi32>
    %17 = arith.xori %14, %16 : vector<1x128xi32>
    %c-1028477387_i32 = arith.constant -1028477387 : i32
    %18 = vector.broadcast %c-1028477387_i32 : i32 to vector<1x128xi32>
    %19 = arith.muli %17, %18 : vector<1x128xi32>
    %c16_i32_0 = arith.constant 16 : i32
    %20 = vector.broadcast %c16_i32_0 : i32 to vector<1x128xi32>
    %21 = arith.shrui %19, %20 : vector<1x128xi32>
    %22 = arith.xori %19, %21 : vector<1x128xi32>
    %c-2147483648_i32 = arith.constant -2147483648 : i32
    %23 = vector.broadcast %c-2147483648_i32 : i32 to vector<1x128xi32>
    %24 = arith.cmpi ult, %22, %23 : vector<1x128xi32>
    %c0_1 = arith.constant 0 : index
    %c0_2 = arith.constant 0 : index
    %25 = vector.load %arg1[%c0_1, %c0_2] : memref<1x128xi32, #tpu.memory_space<vmem>>, vector<1x128xi32>
    %c10_i32 = arith.constant 10 : i32
    %26 = vector.broadcast %c10_i32 : i32 to vector<1x128xi32>
    %27 = arith.select %24, %26, %25 : vector<1x128xi1>, vector<1x128xi32>
    %c0_3 = arith.constant 0 : index
    %c0_4 = arith.constant 0 : index
    %28 = vector.load %arg2[%c0_3, %c0_4] : memref<1x128xi32, #tpu.memory_space<vmem>>, vector<1x128xi32>
    tpu.vector_store %arg2[%c0_3, %c0_4], %27 {strides = array<i32>} : memref<1x128xi32, #tpu.memory_space<vmem>>, vector<1x128xi32>,
    return
  }
}

</mosaic_0001>

<llo_original>
// kernel: tpu_custom_call.1
$region0: #{tpu_custom_call.1}
  #allocation0 [shape = 'u32[]', space=smem, size = 0x4, offset = 0x4, fixed_abs, tag = 'smem constant byte address 0x4 - core index']
  #allocation1 [shape = 'u32[72,128]{1,0:T(1,128)}', space=vmem, size = 0x9000, scoped, tag = 'internal scratch']
  #allocation2 [shape = 's32[1]{0:T(128)S(6)}', space=smem, size = 0x200, scoped, tag = 'scoped memory for tpu_custom_call.1']
  %s0 = inlined_call_operand.<no memory space> [shape: s32[1], index: 0, kind: input, shape index: {}]
  %s1 = inlined_call_operand.hbm [shape: s32[1,128], index: 1, kind: input, shape index: {}, may-alias: {1,2}]
  %s2 = inlined_call_operand.hbm [shape: s32[1,128], index: 2, kind: output, shape index: {}, may-alias: {1,2}]
  %s3 = sld [smem:[#allocation0]]
  $region22: #{tpu_custom_call.1} parent=0
    _
  %s5 = ssub.s32 1, %s3
  %s6 = scalar_select 0, %s5, %s3
  %7 = sst [smem:[#allocation2]] %s0
  $region1: #{tpu_custom_call.1} parent=0
    #allocation3 [shape = 'u8[512]{0}', space=vmem, size = 0x400, scoped, tag = 'input window, operand 1, single buffered']
    #allocation4 [shape = 's32[1]{0}', space=sflag, size = 0x4, scoped, tag = 'scoped memory for tpu_custom_call.1']
    #allocation5 [shape = 's32[1]{0}', space=sflag, size = 0x4, scoped, tag = 'scoped memory for tpu_custom_call.1']
    #allocation6 [shape = 'u8[512]{0}', space=vmem, size = 0x400, scoped, tag = 'output window, operand 0, single buffered']
    %8 = vsyncpa [#allocation4], 0
    %9 = vsyncpa [#allocation5], 0
    // Predicated region
    $region2: #{tpu_custom_call.1} parent=1 // pred_check
      _
    $region3: #{tpu_custom_call.1} parent=1 // pred_check_branch
      %11 = sbr.rel (0) target = $region5
    $region4: #{tpu_custom_call.1} parent=1 // pred_region
      _
    $region5: #{tpu_custom_call.1} parent=1 // pred_fallthru
      _
    // Predicated region
    $region6: #{tpu_custom_call.1} parent=1 // pred_check
      _
    $region7: #{tpu_custom_call.1} parent=1 // pred_check_branch
      %13 = sbr.rel (0) target = $region9
    $region8: #{tpu_custom_call.1} parent=1 // pred_region
      %15 = vsyncadd [#allocation4], 0
      %s17 = sshll.u32 %s1, 4
      %s18 = int_to_ptr.hbm [resolvable:$true] %s17
      %s19 = sshll.u32 [#allocation3], 4
      %s20 = int_to_ptr.vmem [resolvable:$true] %s19
      %22 = dma.hbm_to_vmem [thread:$0]  %s18, 16, %s20, [#allocation4]
    $region9: #{tpu_custom_call.1} parent=1 // pred_fallthru
      _
    // Predicated region
    $region10: #{tpu_custom_call.1} parent=1 // pred_check
      _
    $region11: #{tpu_custom_call.1} parent=1 // pred_check_branch
      %24 = sbr.rel (0) target = $region13
    $region12: #{tpu_custom_call.1} parent=1 // pred_region
      %26 = dma.done [#allocation4], 16
    $region13: #{tpu_custom_call.1} parent=1 // pred_fallthru
      _
    %v27 = vlaneseq
    %v28 = vshrl.u32 %v27, 7
    %v29 = vlaneseq
    %v30 = vand.u32 %v29, 127
    %v31 = vmul.u32 %v28, 128
    %v32 = vadd.s32 %v31, %v30
    %s33 = sld [smem:[#allocation2]]
    %v34 = vmul.u32 %v32, 2654435769
    %v35 = vstv %s33
    %v36 = vadd.s32 %v34, %v35
    %v37 = vshrl.u32 %v36, 16
    %v38 = vxor.u32 %v36, %v37
    %v39 = vmul.u32 %v38, 2246822507
    %v40 = vshrl.u32 %v39, 13
    %v41 = vxor.u32 %v39, %v40
    %v42 = vmul.u32 %v41, 3266489909
    %v43 = vshrl.u32 %v42, 16
    %v44 = vxor.u32 %v42, %v43
    %v45 = vadd.s32 %v44, 2147483648
    %vm47 = vcmp.lt.s32.totalorder %v45, 0
    %v48 = vld [vmem:[#allocation3] sm:$0x1]
    %v49 = vsel %vm47, 10, %v48
    %50 = vst [vmem:[#allocation6] sm:$0x1] %v49
    // Predicated region
    $region14: #{tpu_custom_call.1} parent=1 // pred_check
      _
    $region15: #{tpu_custom_call.1} parent=1 // pred_check_branch
      %52 = sbr.rel (0) target = $region17
    $region16: #{tpu_custom_call.1} parent=1 // pred_region
      %54 = vsyncadd [#allocation5], 0
      %s56 = sshll.u32 [#allocation6], 4
      %s57 = int_to_ptr.vmem [resolvable:$true] %s56
      %s58 = sshll.u32 %s2, 4
      %s59 = int_to_ptr.hbm [resolvable:$true] %s58
      %61 = dma.vmem_to_hbm [thread:$0]  %s57, 16, %s59, [#allocation5]
    $region17: #{tpu_custom_call.1} parent=1 // pred_fallthru
      _
    // Predicated region
    $region18: #{tpu_custom_call.1} parent=1 // pred_check
      _
    $region19: #{tpu_custom_call.1} parent=1 // pred_check_branch
      %63 = sbr.rel (0) target = $region21
    $region20: #{tpu_custom_call.1} parent=1 // pred_region
      %65 = dma.done [#allocation5], 16
    $region21: #{tpu_custom_call.1} parent=1 // pred_fallthru
      _
    %66 = vsyncpa [#allocation4], 1
    %67 = vsyncpa [#allocation5], 1

</llo_original>
